<compile_context>
chip_gen: v6e
topology: v6e:2x2x1
jax: 0.10.0
libtpu: 0.0.40
codegen_flags: <defaults>
</compile_context>

<pallas_src>
import functools

import jax
import jax.numpy as jnp
from jax.experimental import pallas as pl
from jax.experimental.pallas import tpu as pltpu

LANE = 128


def _round_up(x, m):
    return ((x + m - 1) // m) * m


def mlp_kernel(x_ref,
               w1_ref, b1_ref,
               w2_ref, b2_ref,
               w3_ref, b3_ref,
               w4_ref, b4_ref,
               w5_ref, b5_ref,
               out_ref,
               *, act_dtype):
    """Fused 5-layer MLP on one batch tile.

    bf16 MXU operands, f32 accumulation; bias-add + ReLU in f32; hidden
    activations stored as `act_dtype` (bf16 on v6e/v7x, f32 on v5e).
    """

    def layer(h, w_ref, b_ref, relu):
        acc = jnp.dot(h.astype(jnp.bfloat16), w_ref[...],
                      preferred_element_type=jnp.float32)
        acc = acc + b_ref[...]
        if relu:
            acc = jnp.maximum(acc, 0.0).astype(act_dtype)
        return acc

    h = x_ref[...]                       # bf16 tile straight from VMEM
    h = layer(h, w1_ref, b1_ref, True)   # fc1 + ReLU
    h = layer(h, w2_ref, b2_ref, True)   # fc2 + ReLU
    h = layer(h, w3_ref, b3_ref, True)   # fc3 + ReLU
    h = layer(h, w4_ref, b4_ref, True)   # fc4 + ReLU (out padded to 128)
    h = layer(h, w5_ref, b5_ref, False)  # fc5 (classes padded to 128)
    out_ref[...] = h.astype(out_ref.dtype)   # lane-dense, unmasked stores


def make_mlp_params(input_size, num_classes, key):
    """Deterministic synthetic parameters, PyTorch-Linear-style uniform init."""
    dims = [input_size, 128, 256, 128, 64, num_classes]
    params = []
    for i in range(5):
        fan_in, fan_out = dims[i], dims[i + 1]
        key, kw, kb = jax.random.split(key, 3)
        bound = 1.0 / jnp.sqrt(fan_in)
        # stored as [in, out] (transposed vs. torch) so kernel does x @ W + b
        w = jax.random.uniform(kw, (fan_in, fan_out), jnp.float32, -bound, bound)
        b = jax.random.uniform(kb, (1, fan_out), jnp.float32, -bound, bound)
        params.append((w, b))
    return params


def _prepare_kernel_params(params):
    """bf16 weights (cast once), f32 biases; zero-pad every hidden/output width
    up to a multiple of 128 lanes (full MXU tiles, lane-dense intermediates).
    The layer-0 input dim is left unpadded on purpose."""
    dims = [params[0][0].shape[0]] + [w.shape[1] for w, _ in params]
    pdims = [dims[0]] + [_round_up(d, LANE) for d in dims[1:]]
    prepped = []
    for i, (w, b) in enumerate(params):
        pad_in = pdims[i] - w.shape[0]
        pad_out = pdims[i + 1] - w.shape[1]
        if pad_in or pad_out:
            w = jnp.pad(w, ((0, pad_in), (0, pad_out)))
        if pad_out:
            b = jnp.pad(b, ((0, 0), (0, pad_out)))
        prepped.append((w.astype(jnp.bfloat16), b.astype(jnp.float32)))
    return prepped


def _bf16_activations_ok():
    # v6e/v7x have a bf16 VPU; keep f32 intermediates elsewhere (e.g. v5e).
    try:
        kind = jax.devices()[0].device_kind.lower()
    except Exception:
        return False
    return ("v6" in kind) or ("v7" in kind)


def _choose_tb(batch, requested):
    pb8 = _round_up(batch, 8)
    if requested is not None:
        return min(_round_up(requested, 8), pb8)
    if pb8 <= 256:
        return pb8                       # one step; tiny problem
    # Large tiles amortize the ~0.35us/step pipeline overhead; >= 2 steps so
    # v7x megacore can split the batch; cap ~2048 rows/step; round to 16
    # sublanes (bf16 packing) to keep batch padding small.
    nsteps = max(2, pl.cdiv(pb8, 2048))
    return _round_up(pl.cdiv(pb8, nsteps), 16)


def mlp_forward(x, params, *, tb=None, out_dtype=jnp.bfloat16):
    batch, in_features = x.shape
    num_classes = params[-1][0].shape[1]
    padded_classes = _round_up(num_classes, LANE)

    kparams = _prepare_kernel_params(params)
    flat = []
    for w, b in kparams:
        flat.extend([w, b])

    x = x.astype(jnp.bfloat16)           # halve the input HBM stream

    tb = _choose_tb(batch, tb)
    padded_batch = _round_up(batch, tb)
    if padded_batch != batch:
        x = jnp.pad(x, ((0, padded_batch - batch), (0, 0)))
    grid = (padded_batch // tb,)

    x_spec = pl.BlockSpec((tb, in_features), lambda i: (i, 0))
    out_spec = pl.BlockSpec((tb, padded_classes), lambda i: (i, 0))
    # Full-array blocks with constant index_map -> weights/biases stay
    # VMEM-resident across all grid steps (no re-DMA).
    param_specs = [pl.BlockSpec(p.shape, lambda i: (0, 0)) for p in flat]

    pdims = [in_features] + [w.shape[1] for w, _ in kparams]
    flops = 2 * padded_batch * sum(pdims[i] * pdims[i + 1]
                                   for i in range(len(pdims) - 1))
    bytes_accessed = (padded_batch * (in_features + padded_classes) * 2
                      + sum(int(p.size) * p.dtype.itemsize for p in flat))
    cost = pl.CostEstimate(flops=flops, transcendentals=0,
                           bytes_accessed=bytes_accessed)

    kernel = functools.partial(
        mlp_kernel,
        act_dtype=jnp.bfloat16 if _bf16_activations_ok() else jnp.float32)

    out_padded = pl.pallas_call(
        kernel,
        out_shape=jax.ShapeDtypeStruct((padded_batch, padded_classes),
                                       out_dtype),
        grid=grid,
        in_specs=[x_spec] + param_specs,
        out_specs=out_spec,
        compiler_params=pltpu.CompilerParams(
            dimension_semantics=("parallel",),
            vmem_limit_bytes=32 * 1024 * 1024),
        cost_estimate=cost,
    )(x, *flat)

    # NOTE: consumers that can take the padded bf16 slab directly should skip
    # this slice (it is an extra HBM pass over the output).
    return out_padded[:batch, :num_classes]


def mlp_reference(x, params):
    """Pure-JAX reference mirroring the kernel numerics (bf16 matmul operands,
    f32 accumulation, eval-mode dropout == identity)."""
    kparams = _prepare_kernel_params(params)
    num_classes = params[-1][0].shape[1]
    h = x.astype(jnp.bfloat16)
    for i, (w, b) in enumerate(kparams):
        h = jnp.dot(h.astype(jnp.bfloat16), w,
                    preferred_element_type=jnp.float32) + b
        if i < len(kparams) - 1:
            h = jnp.maximum(h, 0.0)
    return h[:, :num_classes]


if __name__ == "__main__":
    input_size = 16
    num_classes = 10
    batch = 8

    key = jax.random.PRNGKey(0)
    key, kx = jax.random.split(key)
    x = jax.random.normal(kx, (batch, input_size), jnp.float32)
    params = make_mlp_params(input_size, num_classes, key)

    out = jax.block_until_ready(mlp_forward(x, params))
    ref = mlp_reference(x, params)

    assert out.shape == (batch, num_classes)
    err = float(jnp.max(jnp.abs(out.astype(jnp.float32) - ref)))
    assert err < 2e-2, err   # bf16 output quantization + MXU/XLA rounding

    print("KERNEL_OK")
</pallas_src>

<mosaic_0001>
module attributes {stable_mosaic.version = 11 : i64} {
  func.func @mlp_kernel(%arg0: i32, %arg1: memref<8x16xbf16, #tpu.memory_space<vmem>>, %arg2: memref<16x128xbf16, #tpu.memory_space<vmem>>, %arg3: memref<1x128xf32, #tpu.memory_space<vmem>>, %arg4: memref<128x256xbf16, #tpu.memory_space<vmem>>, %arg5: memref<1x256xf32, #tpu.memory_space<vmem>>, %arg6: memref<256x128xbf16, #tpu.memory_space<vmem>>, %arg7: memref<1x128xf32, #tpu.memory_space<vmem>>, %arg8: memref<128x128xbf16, #tpu.memory_space<vmem>>, %arg9: memref<1x128xf32, #tpu.memory_space<vmem>>, %arg10: memref<128x128xbf16, #tpu.memory_space<vmem>>, %arg11: memref<1x128xf32, #tpu.memory_space<vmem>>, %arg12: memref<8x128xbf16, #tpu.memory_space<vmem>>) attributes {dimension_semantics = [#tpu.dimension_semantics<parallel>], iteration_bounds = array<i64: 1>, scalar_prefetch = 0 : i64, scratch_operands = 0 : i64, tpu.core_type = #tpu.core_type<tc>, window_params = [{transform_indices = @transform_0, window_bounds = array<i64: 8, 16>}, {pipeline_mode = #tpu.pipeline_mode<synchronous>, transform_indices = @transform_1, window_bounds = array<i64: 16, 128>}, {pipeline_mode = #tpu.pipeline_mode<synchronous>, transform_indices = @transform_2, window_bounds = array<i64: 1, 128>}, {pipeline_mode = #tpu.pipeline_mode<synchronous>, transform_indices = @transform_3, window_bounds = array<i64: 128, 256>}, {pipeline_mode = #tpu.pipeline_mode<synchronous>, transform_indices = @transform_4, window_bounds = array<i64: 1, 256>}, {pipeline_mode = #tpu.pipeline_mode<synchronous>, transform_indices = @transform_5, window_bounds = array<i64: 256, 128>}, {pipeline_mode = #tpu.pipeline_mode<synchronous>, transform_indices = @transform_6, window_bounds = array<i64: 1, 128>}, {pipeline_mode = #tpu.pipeline_mode<synchronous>, transform_indices = @transform_7, window_bounds = array<i64: 128, 128>}, {pipeline_mode = #tpu.pipeline_mode<synchronous>, transform_indices = @transform_8, window_bounds = array<i64: 1, 128>}, {pipeline_mode = #tpu.pipeline_mode<synchronous>, transform_indices = @transform_9, window_bounds = array<i64: 128, 128>}, {pipeline_mode = #tpu.pipeline_mode<synchronous>, transform_indices = @transform_10, window_bounds = array<i64: 1, 128>}, {transform_indices = @transform_11, window_bounds = array<i64: 8, 128>}]} {
    %c0 = arith.constant 0 : index
    %c0_0 = arith.constant 0 : index
    %0 = vector.load %arg1[%c0, %c0_0] : memref<8x16xbf16, #tpu.memory_space<vmem>>, vector<8x16xbf16>
    %c0_1 = arith.constant 0 : index
    %c0_2 = arith.constant 0 : index
    %1 = vector.load %arg2[%c0_1, %c0_2] : memref<16x128xbf16, #tpu.memory_space<vmem>>, vector<16x128xbf16>
    %cst = arith.constant dense<0.000000e+00> : vector<8x128xf32>
    %2 = tpu.matmul %0, %1, %cst {dimension_numbers = #tpu.dot_dimension_numbers<[1], [0], [0], [1], [0, 0, 1, 1], [], []>} : vector<8x16xbf16>, vector<16x128xbf16>, vector<8x128xf32> -> vector<8x128xf32>
    %c0_3 = arith.constant 0 : index
    %c0_4 = arith.constant 0 : index
    %3 = vector.load %arg3[%c0_3, %c0_4] : memref<1x128xf32, #tpu.memory_space<vmem>>, vector<1x128xf32>
    %4 = vector.broadcast %3 : vector<1x128xf32> to vector<8x128xf32>
    %5 = arith.addf %2, %4 : vector<8x128xf32>
    %cst_5 = arith.constant 0.000000e+00 : f32
    %6 = vector.broadcast %cst_5 : f32 to vector<8x128xf32>
    %7 = arith.maximumf %5, %6 : vector<8x128xf32>
    %8 = arith.truncf %7 : vector<8x128xf32> to vector<8x128xbf16>
    %c0_6 = arith.constant 0 : index
    %c0_7 = arith.constant 0 : index
    %9 = vector.load %arg4[%c0_6, %c0_7] : memref<128x256xbf16, #tpu.memory_space<vmem>>, vector<128x256xbf16>
    %cst_8 = arith.constant dense<0.000000e+00> : vector<8x256xf32>
    %10 = tpu.matmul %8, %9, %cst_8 {dimension_numbers = #tpu.dot_dimension_numbers<[1], [0], [0], [1], [0, 0, 1, 1], [], []>} : vector<8x128xbf16>, vector<128x256xbf16>, vector<8x256xf32> -> vector<8x256xf32>
    %c0_9 = arith.constant 0 : index
    %c0_10 = arith.constant 0 : index
    %11 = vector.load %arg5[%c0_9, %c0_10] : memref<1x256xf32, #tpu.memory_space<vmem>>, vector<1x256xf32>
    %12 = vector.broadcast %11 : vector<1x256xf32> to vector<8x256xf32>
    %13 = arith.addf %10, %12 : vector<8x256xf32>
    %cst_11 = arith.constant 0.000000e+00 : f32
    %14 = vector.broadcast %cst_11 : f32 to vector<8x256xf32>
    %15 = arith.maximumf %13, %14 : vector<8x256xf32>
    %16 = arith.truncf %15 : vector<8x256xf32> to vector<8x256xbf16>
    %c0_12 = arith.constant 0 : index
    %c0_13 = arith.constant 0 : index
    %17 = vector.load %arg6[%c0_12, %c0_13] : memref<256x128xbf16, #tpu.memory_space<vmem>>, vector<256x128xbf16>
    %cst_14 = arith.constant dense<0.000000e+00> : vector<8x128xf32>
    %18 = tpu.matmul %16, %17, %cst_14 {dimension_numbers = #tpu.dot_dimension_numbers<[1], [0], [0], [1], [0, 0, 1, 1], [], []>} : vector<8x256xbf16>, vector<256x128xbf16>, vector<8x128xf32> -> vector<8x128xf32>
    %c0_15 = arith.constant 0 : index
    %c0_16 = arith.constant 0 : index
    %19 = vector.load %arg7[%c0_15, %c0_16] : memref<1x128xf32, #tpu.memory_space<vmem>>, vector<1x128xf32>
    %20 = vector.broadcast %19 : vector<1x128xf32> to vector<8x128xf32>
    %21 = arith.addf %18, %20 : vector<8x128xf32>
    %cst_17 = arith.constant 0.000000e+00 : f32
    %22 = vector.broadcast %cst_17 : f32 to vector<8x128xf32>
    %23 = arith.maximumf %21, %22 : vector<8x128xf32>
    %24 = arith.truncf %23 : vector<8x128xf32> to vector<8x128xbf16>
    %c0_18 = arith.constant 0 : index
    %c0_19 = arith.constant 0 : index
    %25 = vector.load %arg8[%c0_18, %c0_19] : memref<128x128xbf16, #tpu.memory_space<vmem>>, vector<128x128xbf16>
    %cst_20 = arith.constant dense<0.000000e+00> : vector<8x128xf32>
    %26 = tpu.matmul %24, %25, %cst_20 {dimension_numbers = #tpu.dot_dimension_numbers<[1], [0], [0], [1], [0, 0, 1, 1], [], []>} : vector<8x128xbf16>, vector<128x128xbf16>, vector<8x128xf32> -> vector<8x128xf32>
    %c0_21 = arith.constant 0 : index
    %c0_22 = arith.constant 0 : index
    %27 = vector.load %arg9[%c0_21, %c0_22] : memref<1x128xf32, #tpu.memory_space<vmem>>, vector<1x128xf32>
    %28 = vector.broadcast %27 : vector<1x128xf32> to vector<8x128xf32>
    %29 = arith.addf %26, %28 : vector<8x128xf32>
    %cst_23 = arith.constant 0.000000e+00 : f32
    %30 = vector.broadcast %cst_23 : f32 to vector<8x128xf32>
    %31 = arith.maximumf %29, %30 : vector<8x128xf32>
    %32 = arith.truncf %31 : vector<8x128xf32> to vector<8x128xbf16>
    %c0_24 = arith.constant 0 : index
    %c0_25 = arith.constant 0 : index
    %33 = vector.load %arg10[%c0_24, %c0_25] : memref<128x128xbf16, #tpu.memory_space<vmem>>, vector<128x128xbf16>
    %cst_26 = arith.constant dense<0.000000e+00> : vector<8x128xf32>
    %34 = tpu.matmul %32, %33, %cst_26 {dimension_numbers = #tpu.dot_dimension_numbers<[1], [0], [0], [1], [0, 0, 1, 1], [], []>} : vector<8x128xbf16>, vector<128x128xbf16>, vector<8x128xf32> -> vector<8x128xf32>
    %c0_27 = arith.constant 0 : index
    %c0_28 = arith.constant 0 : index
    %35 = vector.load %arg11[%c0_27, %c0_28] : memref<1x128xf32, #tpu.memory_space<vmem>>, vector<1x128xf32>
    %36 = vector.broadcast %35 : vector<1x128xf32> to vector<8x128xf32>
    %37 = arith.addf %34, %36 : vector<8x128xf32>
    %38 = arith.truncf %37 : vector<8x128xf32> to vector<8x128xbf16>
    %c0_29 = arith.constant 0 : index
    %c0_30 = arith.constant 0 : index
    %39 = vector.load %arg12[%c0_29, %c0_30] : memref<8x128xbf16, #tpu.memory_space<vmem>>, vector<8x128xbf16>
    tpu.vector_store %arg12[%c0_29, %c0_30], %38 {strides = array<i32>} : memref<8x128xbf16, #tpu.memory_space<vmem>>, vector<8x128xbf16>,
    return
  }
  func.func @transform_0(%arg0: i32) -> (i32, i32) {
    %c0_i32 = arith.constant 0 : i32
    %c0_i32_0 = arith.constant 0 : i32
    return %arg0, %c0_i32 : i32, i32
  }
  func.func @transform_1(%arg0: i32) -> (i32, i32) {
    %c0_i32 = arith.constant 0 : i32
    %c0_i32_0 = arith.constant 0 : i32
    %c0_i32_1 = arith.constant 0 : i32
    return %c0_i32, %c0_i32_0 : i32, i32
  }
  func.func @transform_2(%arg0: i32) -> (i32, i32) {
    %c0_i32 = arith.constant 0 : i32
    %c0_i32_0 = arith.constant 0 : i32
    %c0_i32_1 = arith.constant 0 : i32
    return %c0_i32, %c0_i32_0 : i32, i32
  }
  func.func @transform_3(%arg0: i32) -> (i32, i32) {
    %c0_i32 = arith.constant 0 : i32
    %c0_i32_0 = arith.constant 0 : i32
    %c0_i32_1 = arith.constant 0 : i32
    return %c0_i32, %c0_i32_0 : i32, i32
  }
  func.func @transform_4(%arg0: i32) -> (i32, i32) {
    %c0_i32 = arith.constant 0 : i32
    %c0_i32_0 = arith.constant 0 : i32
    %c0_i32_1 = arith.constant 0 : i32
    return %c0_i32, %c0_i32_0 : i32, i32
  }
  func.func @transform_5(%arg0: i32) -> (i32, i32) {
    %c0_i32 = arith.constant 0 : i32
    %c0_i32_0 = arith.constant 0 : i32
    %c0_i32_1 = arith.constant 0 : i32
    return %c0_i32, %c0_i32_0 : i32, i32
  }
  func.func @transform_6(%arg0: i32) -> (i32, i32) {
    %c0_i32 = arith.constant 0 : i32
    %c0_i32_0 = arith.constant 0 : i32
    %c0_i32_1 = arith.constant 0 : i32
    return %c0_i32, %c0_i32_0 : i32, i32
  }
  func.func @transform_7(%arg0: i32) -> (i32, i32) {
    %c0_i32 = arith.constant 0 : i32
    %c0_i32_0 = arith.constant 0 : i32
    %c0_i32_1 = arith.constant 0 : i32
    return %c0_i32, %c0_i32_0 : i32, i32
  }
  func.func @transform_8(%arg0: i32) -> (i32, i32) {
    %c0_i32 = arith.constant 0 : i32
    %c0_i32_0 = arith.constant 0 : i32
    %c0_i32_1 = arith.constant 0 : i32
    return %c0_i32, %c0_i32_0 : i32, i32
  }
  func.func @transform_9(%arg0: i32) -> (i32, i32) {
    %c0_i32 = arith.constant 0 : i32
    %c0_i32_0 = arith.constant 0 : i32
    %c0_i32_1 = arith.constant 0 : i32
    return %c0_i32, %c0_i32_0 : i32, i32
  }
  func.func @transform_10(%arg0: i32) -> (i32, i32) {
    %c0_i32 = arith.constant 0 : i32
    %c0_i32_0 = arith.constant 0 : i32
    %c0_i32_1 = arith.constant 0 : i32
    return %c0_i32, %c0_i32_0 : i32, i32
  }
  func.func @transform_11(%arg0: i32) -> (i32, i32) {
    %c0_i32 = arith.constant 0 : i32
    %c0_i32_0 = arith.constant 0 : i32
    return %arg0, %c0_i32 : i32, i32
  }
}

</mosaic_0001>

<llo_original>
// kernel: tpu_custom_call.1
$region0: #{tpu_custom_call.1}
  #allocation0 [shape = 'u32[]', space=smem, size = 0x4, offset = 0x4, fixed_abs, tag = 'smem constant byte address 0x4 - core index']
  #allocation1 [shape = 'u32[144,128]{1,0:T(1,128)}', space=vmem, size = 0x12000, scoped, tag = 'internal scratch']
  %s0 = inlined_call_operand.hbm [shape: bf16[8,16], index: 0, kind: input, shape index: {}]
  %s1 = inlined_call_operand.hbm [shape: bf16[16,128], index: 1, kind: input, shape index: {}]
  %s2 = inlined_call_operand.vmem [shape: f32[1,128], index: 2, kind: input, shape index: {}]
  %s3 = inlined_call_operand.hbm [shape: bf16[128,256], index: 3, kind: input, shape index: {}]
  %s4 = inlined_call_operand.vmem [shape: f32[1,256], index: 4, kind: input, shape index: {}]
  %s5 = inlined_call_operand.hbm [shape: bf16[256,128], index: 5, kind: input, shape index: {}]
  %s6 = inlined_call_operand.vmem [shape: f32[1,128], index: 6, kind: input, shape index: {}]
  %s7 = inlined_call_operand.hbm [shape: bf16[128,128], index: 7, kind: input, shape index: {}]
  %s8 = inlined_call_operand.vmem [shape: f32[1,128], index: 8, kind: input, shape index: {}]
  %s9 = inlined_call_operand.hbm [shape: bf16[128,128], index: 9, kind: input, shape index: {}]
  %s10 = inlined_call_operand.vmem [shape: f32[1,128], index: 10, kind: input, shape index: {}]
  %s11 = inlined_call_operand.hbm [shape: bf16[8,128], index: 11, kind: output, shape index: {}]
  %s12 = sld [smem:[#allocation0]]
  $region78: #{tpu_custom_call.1} parent=0
    _
  %s14 = ssub.s32 1, %s12
  %s15 = scalar_select 0, %s14, %s12
  $region1: #{tpu_custom_call.1} parent=0
    #allocation2 [shape = 'u8[2048]{0}', space=vmem, size = 0x800, scoped, tag = 'input window, operand 0, single buffered']
    #allocation3 [shape = 's32[1]{0}', space=sflag, size = 0x4, scoped, tag = 'scoped memory for tpu_custom_call.1']
    #allocation4 [shape = 's32[1]{0}', space=sflag, size = 0x4, scoped, tag = 'scoped memory for tpu_custom_call.1']
    #allocation5 [shape = 'u8[4096]{0}', space=vmem, size = 0x1000, scoped, tag = 'input window, operand 1, single buffered']
    #allocation6 [shape = 's32[1]{0}', space=sflag, size = 0x4, scoped, tag = 'scoped memory for tpu_custom_call.1']
    #allocation7 [shape = 'u8[65536]{0}', space=vmem, size = 0x10000, scoped, tag = 'input window, operand 3, single buffered']
    #allocation8 [shape = 'u8[65536]{0}', space=vmem, size = 0x10000, scoped, tag = 'input window, operand 5, single buffered']
    #allocation9 [shape = 's32[1]{0}', space=sflag, size = 0x4, scoped, tag = 'scoped memory for tpu_custom_call.1']
    #allocation10 [shape = 'u8[32768]{0}', space=vmem, size = 0x8000, scoped, tag = 'input window, operand 7, single buffered']
    #allocation11 [shape = 'u8[32768]{0}', space=vmem, size = 0x8000, scoped, tag = 'input window, operand 9, single buffered']
    #allocation12 [shape = 's32[1]{0}', space=sflag, size = 0x4, scoped, tag = 'scoped memory for tpu_custom_call.1']
    #allocation13 [shape = 'u8[2048]{0}', space=vmem, size = 0x800, scoped, tag = 'output window, operand 0, single buffered']
    %16 = vsyncpa [#allocation3], 0
    %17 = vsyncpa [#allocation6], 0
    %18 = vsyncpa [#allocation9], 0
    %19 = vsyncpa [#allocation12], 0
    %20 = vsyncpa [#allocation4], 0
    // Predicated region
    $region2: #{tpu_custom_call.1} parent=1 // pred_check
      _
    $region3: #{tpu_custom_call.1} parent=1 // pred_check_branch
      %22 = sbr.rel (0) target = $region5
    $region4: #{tpu_custom_call.1} parent=1 // pred_region
      %s24 = ssub.s32 64, 64
      %25 = vsyncadd [#allocation3], %s24
      %s27 = sshll.u32 [#allocation2], 4
      %s28 = int_to_ptr.vmem [resolvable:$true] %s27
      %30 = dma.hbm_to_vmem [thread:$0]  %s0, 64, %s28, [#allocation3]
    $region5: #{tpu_custom_call.1} parent=1 // pred_fallthru
      _
    // Predicated region
    $region6: #{tpu_custom_call.1} parent=1 // pred_check
      _
    $region7: #{tpu_custom_call.1} parent=1 // pred_check_branch
      %32 = sbr.rel (0) target = $region9
    $region8: #{tpu_custom_call.1} parent=1 // pred_region
      %s34 = ssub.s32 128, 128
      %35 = vsyncadd [#allocation6], %s34
      %s36 = sshll.u32 [#allocation5], 4
      %s37 = int_to_ptr.vmem [resolvable:$true] %s36
      %42 = dma.hbm_to_vmem [thread:$0]  %s1, 128, %s37, [#allocation6], 64, 64, 4
    $region9: #{tpu_custom_call.1} parent=1 // pred_fallthru
      _
    // Predicated region
    $region10: #{tpu_custom_call.1} parent=1 // pred_check
      _
    $region11: #{tpu_custom_call.1} parent=1 // pred_check_branch
      %44 = sbr.rel (0) target = $region13
    $region12: #{tpu_custom_call.1} parent=1 // pred_region
      _
    $region13: #{tpu_custom_call.1} parent=1 // pred_fallthru
      _
    // Predicated region
    $region14: #{tpu_custom_call.1} parent=1 // pred_check
      _
    $region15: #{tpu_custom_call.1} parent=1 // pred_check_branch
      %46 = sbr.rel (0) target = $region17
    $region16: #{tpu_custom_call.1} parent=1 // pred_region
      %s48 = ssub.s32 2048, 2048
      %49 = vsyncadd [#allocation6], %s48
      %s50 = sshll.u32 [#allocation7], 4
      %s51 = int_to_ptr.vmem [resolvable:$true] %s50
      %56 = dma.hbm_to_vmem [thread:$0]  %s3, 2048, %s51, [#allocation6], 128, 128, 8
    $region17: #{tpu_custom_call.1} parent=1 // pred_fallthru
      _
    // Predicated region
    $region18: #{tpu_custom_call.1} parent=1 // pred_check
      _
    $region19: #{tpu_custom_call.1} parent=1 // pred_check_branch
      %58 = sbr.rel (0) target = $region21
    $region20: #{tpu_custom_call.1} parent=1 // pred_region
      _
    $region21: #{tpu_custom_call.1} parent=1 // pred_fallthru
      _
    // Predicated region
    $region22: #{tpu_custom_call.1} parent=1 // pred_check
      _
    $region23: #{tpu_custom_call.1} parent=1 // pred_check_branch
      %60 = sbr.rel (0) target = $region25
    $region24: #{tpu_custom_call.1} parent=1 // pred_region
      %s62 = ssub.s32 2048, 2048
      %63 = vsyncadd [#allocation9], %s62
      %s64 = sshll.u32 [#allocation8], 4
      %s65 = int_to_ptr.vmem [resolvable:$true] %s64
      %70 = dma.hbm_to_vmem [thread:$0]  %s5, 2048, %s65, [#allocation9], 64, 64, 4
    $region25: #{tpu_custom_call.1} parent=1 // pred_fallthru
      _
    // Predicated region
    $region26: #{tpu_custom_call.1} parent=1 // pred_check
      _
    $region27: #{tpu_custom_call.1} parent=1 // pred_check_branch
      %72 = sbr.rel (0) target = $region29
    $region28: #{tpu_custom_call.1} parent=1 // pred_region
      _
    $region29: #{tpu_custom_call.1} parent=1 // pred_fallthru
      _
    // Predicated region
    $region30: #{tpu_custom_call.1} parent=1 // pred_check
      _
    $region31: #{tpu_custom_call.1} parent=1 // pred_check_branch
      %74 = sbr.rel (0) target = $region33
    $region32: #{tpu_custom_call.1} parent=1 // pred_region
      %s76 = ssub.s32 1024, 1024
      %77 = vsyncadd [#allocation9], %s76
      %s78 = sshll.u32 [#allocation10], 4
      %s79 = int_to_ptr.vmem [resolvable:$true] %s78
      %84 = dma.hbm_to_vmem [thread:$0]  %s7, 1024, %s79, [#allocation9], 64, 64, 4
    $region33: #{tpu_custom_call.1} parent=1 // pred_fallthru
      _
    // Predicated region
    $region34: #{tpu_custom_call.1} parent=1 // pred_check
      _
    $region35: #{tpu_custom_call.1} parent=1 // pred_check_branch
      %86 = sbr.rel (0) target = $region37
    $region36: #{tpu_custom_call.1} parent=1 // pred_region
      _
    $region37: #{tpu_custom_call.1} parent=1 // pred_fallthru
      _
    // Predicated region
    $region38: #{tpu_custom_call.1} parent=1 // pred_check
      _
    $region39: #{tpu_custom_call.1} parent=1 // pred_check_branch
      %88 = sbr.rel (0) target = $region41
    $region40: #{tpu_custom_call.1} parent=1 // pred_region
      %s90 = ssub.s32 1024, 1024
      %91 = vsyncadd [#allocation12], %s90
      %s92 = sshll.u32 [#allocation11], 4
      %s93 = int_to_ptr.vmem [resolvable:$true] %s92
      %98 = dma.hbm_to_vmem [thread:$0]  %s9, 1024, %s93, [#allocation12], 64, 64, 4
    $region41: #{tpu_custom_call.1} parent=1 // pred_fallthru
      _
    // Predicated region
    $region42: #{tpu_custom_call.1} parent=1 // pred_check
      _
    $region43: #{tpu_custom_call.1} parent=1 // pred_check_branch
      %100 = sbr.rel (0) target = $region45
    $region44: #{tpu_custom_call.1} parent=1 // pred_region
      _
    $region45: #{tpu_custom_call.1} parent=1 // pred_fallthru
      _
    // Predicated region
    $region46: #{tpu_custom_call.1} parent=1 // pred_check
      _
    $region47: #{tpu_custom_call.1} parent=1 // pred_check_branch
      %102 = sbr.rel (0) target = $region49
    $region48: #{tpu_custom_call.1} parent=1 // pred_region
      %103 = dma.done [#allocation3], 64
    $region49: #{tpu_custom_call.1} parent=1 // pred_fallthru
      _
    // Predicated region
    $region50: #{tpu_custom_call.1} parent=1 // pred_check
      _
    $region51: #{tpu_custom_call.1} parent=1 // pred_check_branch
      %105 = sbr.rel (0) target = $region53
    $region52: #{tpu_custom_call.1} parent=1 // pred_region
      %106 = dma.done [#allocation6], 128
    $region53: #{tpu_custom_call.1} parent=1 // pred_fallthru
      _
    // Predicated region
    $region54: #{tpu_custom_call.1} parent=1 // pred_check
      _
    $region55: #{tpu_custom_call.1} parent=1 // pred_check_branch
      %108 = sbr.rel (0) target = $region57
    $region56: #{tpu_custom_call.1} parent=1 // pred_region
      %109 = dma.done [#allocation6], 2048
    $region57: #{tpu_custom_call.1} parent=1 // pred_fallthru
      _
    // Predicated region
    $region58: #{tpu_custom_call.1} parent=1 // pred_check
      _
    $region59: #{tpu_custom_call.1} parent=1 // pred_check_branch
      %111 = sbr.rel (0) target = $region61
    $region60: #{tpu_custom_call.1} parent=1 // pred_region
      %112 = dma.done [#allocation9], 2048
    $region61: #{tpu_custom_call.1} parent=1 // pred_fallthru
      _
    // Predicated region
    $region62: #{tpu_custom_call.1} parent=1 // pred_check
      _
    $region63: #{tpu_custom_call.1} parent=1 // pred_check_branch
      %114 = sbr.rel (0) target = $region65
    $region64: #{tpu_custom_call.1} parent=1 // pred_region
      %115 = dma.done [#allocation9], 1024
    $region65: #{tpu_custom_call.1} parent=1 // pred_fallthru
      _
    // Predicated region
    $region66: #{tpu_custom_call.1} parent=1 // pred_check
      _
    $region67: #{tpu_custom_call.1} parent=1 // pred_check_branch
      %117 = sbr.rel (0) target = $region69
    $region68: #{tpu_custom_call.1} parent=1 // pred_region
      %118 = dma.done [#allocation12], 1024
    $region69: #{tpu_custom_call.1} parent=1 // pred_fallthru
      _
    %v120 = vld [vmem:[#allocation2] sm:$0xf]
    %v121 = vld [vmem:[#allocation5] sm:$0xf]
    %v122 = vld [vmem:[#allocation5 + $0x4] sm:$0xf]
    %v123 = vld [vmem:[%s2] sm:$0x1]
    %v125 = vlaneseq
    %v126 = vshrl.u32 %v125, 7
    %v127 = vsub.s32 0, %v126
    %v128 = vrot.slane %v123, %v127
    %v132 = vunpack.c.l.b16 %v121
    %v133 = vunpack.c.l.b16 %v122
    %v134 = vpack.c.b16 %v133, %v132
    %vm136 = vcmask 130048
    %v138 = vsel %vm136, %v120, 0
    %140 = vmatprep.subr.bf16.mxu0 0
    %141 = vmatpush1.bf16.msra.mxu0 0
    %142 = vmatprep.subr.bf16.mxu0 0
    %143 = vmatpush1.bf16.msra.mxu0 0
    %144 = vmatprep.subr.bf16.mxu0 0
    %145 = vmatpush1.bf16.msra.mxu0 0
    %146 = vmatprep.subr.bf16.mxu0 0
    %147 = vmatpush1.bf16.msra.mxu0 0
    %148 = vmatprep.subr.bf16.mxu0 0
    %149 = vmatpush1.bf16.msra.mxu0 0
    %150 = vmatprep.subr.bf16.mxu0 0
    %151 = vmatpush1.bf16.msra.mxu0 0
    %152 = vmatprep.subr.bf16.mxu0 0
    %153 = vmatpush1.bf16.msra.mxu0 0
    %154 = vmatprep.subr.bf16.mxu0 0
    %155 = vmatpush1.bf16.msra.mxu0 %v134
    %156 = vmatprep.subr.bf16.mxu0 0
    %157 = vmatpush2.bf16.msra.mxu0 0
    %158 = vmatprep.subr.bf16.mxu0 0
    %159 = vmatpush2.bf16.msra.mxu0 0
    %160 = vmatprep.subr.bf16.mxu0 0
    %161 = vmatpush2.bf16.msra.mxu0 0
    %162 = vmatprep.subr.bf16.mxu0 0
    %163 = vmatpush2.bf16.msra.mxu0 0
    %164 = vmatprep.subr.bf16.mxu0 0
    %165 = vmatpush2.bf16.msra.mxu0 0
    %166 = vmatprep.subr.bf16.mxu0 0
    %167 = vmatpush2.bf16.msra.mxu0 0
    %168 = vmatprep.subr.bf16.mxu0 0
    %169 = vmatpush2.bf16.msra.mxu0 0
    %170 = vmatprep.subr.bf16.mxu0 0
    %171 = vmatpush2.bf16.msra.mxu0 0
    %172 = vmatprep.mubr.bf16.mxu0 0
    %173 = vmatmul.mubr.bf16.gmra.mxu0 %v138
    %v174 = vpop.f32.mrf.mxu0
    %v175 = vadd.f32 %v128, %v174
    %v176 = vpop.f32.mrf.mxu0
    %v177 = vpop.f32.mrf.mxu0
    %v178 = vpop.f32.mrf.mxu0
    %179 = vdwg.mxu0
    %v180 = vmax.f32 %v175, 0.0
    %v181 = vpack.c.bf16 %v180, %v180
    %v182 = vld [vmem:[#allocation7] sm:$0xff]
    %v183 = vld [vmem:[#allocation7 + $0x8] sm:$0xff]
    %v184 = vld [vmem:[#allocation7 + $0x10] sm:$0xff]
    %v185 = vld [vmem:[#allocation7 + $0x18] sm:$0xff]
    %v186 = vld [vmem:[#allocation7 + $0x20] sm:$0xff]
    %v187 = vld [vmem:[#allocation7 + $0x28] sm:$0xff]
    %v188 = vld [vmem:[#allocation7 + $0x30] sm:$0xff]
    %v189 = vld [vmem:[#allocation7 + $0x38] sm:$0xff]
    %v190 = vld [vmem:[#allocation7 + $0x40] sm:$0xff]
    %v191 = vld [vmem:[#allocation7 + $0x48] sm:$0xff]
    %v192 = vld [vmem:[#allocation7 + $0x50] sm:$0xff]
    %v193 = vld [vmem:[#allocation7 + $0x58] sm:$0xff]
    %v194 = vld [vmem:[#allocation7 + $0x60] sm:$0xff]
    %v195 = vld [vmem:[#allocation7 + $0x68] sm:$0xff]
    %v196 = vld [vmem:[#allocation7 + $0x70] sm:$0xff]
    %v197 = vld [vmem:[#allocation7 + $0x78] sm:$0xff]
    %v198 = vld [vmem:[%s4] sm:$0x3]
    %v200 = vlaneseq
    %v201 = vshrl.u32 %v200, 7
    %v202 = vsub.s32 0, %v201
    %v203 = vrot.slane %v198, %v202
    %v204 = vlaneseq
    %v205 = vshrl.u32 %v204, 7
    %v206 = vsub.s32 1, %v205
    %v207 = vrot.slane %v198, %v206
    %v226 = vunpack.c.l.b16 %v182
    %v227 = vunpack.c.h.b16 %v182
    %v228 = vunpack.c.l.b16 %v183
    %v229 = vunpack.c.h.b16 %v183
    %v230 = vunpack.c.l.b16 %v184
    %v231 = vunpack.c.h.b16 %v184
    %v232 = vunpack.c.l.b16 %v185
    %v233 = vunpack.c.h.b16 %v185
    %v234 = vunpack.c.l.b16 %v186
    %v235 = vunpack.c.h.b16 %v186
    %v236 = vunpack.c.l.b16 %v187
    %v237 = vunpack.c.h.b16 %v187
    %v238 = vunpack.c.l.b16 %v188
    %v239 = vunpack.c.h.b16 %v188
    %v240 = vunpack.c.l.b16 %v189
    %v241 = vunpack.c.h.b16 %v189
    %v242 = vunpack.c.l.b16 %v190
    %v243 = vunpack.c.h.b16 %v190
    %v244 = vunpack.c.l.b16 %v191
    %v245 = vunpack.c.h.b16 %v191
    %v246 = vunpack.c.l.b16 %v192
    %v247 = vunpack.c.h.b16 %v192
    %v248 = vunpack.c.l.b16 %v193
    %v249 = vunpack.c.h.b16 %v193
    %v250 = vunpack.c.l.b16 %v194
    %v251 = vunpack.c.h.b16 %v194
    %v252 = vunpack.c.l.b16 %v195
    %v253 = vunpack.c.h.b16 %v195
    %v254 = vunpack.c.l.b16 %v196
    %v255 = vunpack.c.h.b16 %v196
    %v256 = vunpack.c.l.b16 %v197
    %v257 = vunpack.c.h.b16 %v197
    %v258 = vpack.c.b16 %v228, %v226
    %v259 = vpack.c.b16 %v229, %v227
    %v260 = vpack.c.b16 %v232, %v230
    %v261 = vpack.c.b16 %v233, %v231
    %v262 = vpack.c.b16 %v236, %v234
    %v263 = vpack.c.b16 %v237, %v235
    %v264 = vpack.c.b16 %v240, %v238
    %v265 = vpack.c.b16 %v241, %v239
    %v266 = vpack.c.b16 %v244, %v242
    %v267 = vpack.c.b16 %v245, %v243
    %v268 = vpack.c.b16 %v248, %v246
    %v269 = vpack.c.b16 %v249, %v247
    %v270 = vpack.c.b16 %v252, %v250
    %v271 = vpack.c.b16 %v253, %v251
    %v272 = vpack.c.b16 %v256, %v254
    %v273 = vpack.c.b16 %v257, %v255
    %290 = vmatprep.subr.bf16.mxu0 %v273
    %291 = vmatpush1.bf16.msra.mxu0 %v272
    %292 = vmatprep.subr.bf16.mxu0 %v271
    %293 = vmatpush1.bf16.msra.mxu0 %v270
    %294 = vmatprep.subr.bf16.mxu0 %v269
    %295 = vmatpush1.bf16.msra.mxu0 %v268
    %296 = vmatprep.subr.bf16.mxu0 %v267
    %297 = vmatpush1.bf16.msra.mxu0 %v266
    %298 = vmatprep.subr.bf16.mxu0 %v265
    %299 = vmatpush1.bf16.msra.mxu0 %v264
    %300 = vmatprep.subr.bf16.mxu0 %v263
    %301 = vmatpush1.bf16.msra.mxu0 %v262
    %302 = vmatprep.subr.bf16.mxu0 %v261
    %303 = vmatpush1.bf16.msra.mxu0 %v260
    %304 = vmatprep.subr.bf16.mxu0 %v259
    %305 = vmatpush1.bf16.msra.mxu0 %v258
    %306 = vmatprep.subr.bf16.mxu0 0
    %307 = vmatpush2.bf16.msra.mxu0 0
    %308 = vmatprep.subr.bf16.mxu0 0
    %309 = vmatpush2.bf16.msra.mxu0 0
    %310 = vmatprep.subr.bf16.mxu0 0
    %311 = vmatpush2.bf16.msra.mxu0 0
    %312 = vmatprep.subr.bf16.mxu0 0
    %313 = vmatpush2.bf16.msra.mxu0 0
    %314 = vmatprep.subr.bf16.mxu0 0
    %315 = vmatpush2.bf16.msra.mxu0 0
    %316 = vmatprep.subr.bf16.mxu0 0
    %317 = vmatpush2.bf16.msra.mxu0 0
    %318 = vmatprep.subr.bf16.mxu0 0
    %319 = vmatpush2.bf16.msra.mxu0 0
    %320 = vmatprep.subr.bf16.mxu0 0
    %321 = vmatpush2.bf16.msra.mxu0 0
    %322 = vmatprep.mubr.bf16.mxu0 0
    %323 = vmatmul.mubr.bf16.gmra.mxu0 %v181
    %v324 = vpop.f32.mrf.mxu0
    %v325 = vadd.f32 %v203, %v324
    %v326 = vpop.f32.mrf.mxu0
    %v327 = vadd.f32 %v207, %v326
    %v328 = vpop.f32.mrf.mxu0
    %v329 = vpop.f32.mrf.mxu0
    %330 = vdwg.mxu0
    %v331 = vmax.f32 %v325, 0.0
    %v332 = vmax.f32 %v327, 0.0
    %v333 = vpack.c.bf16 %v331, %v331
    %v334 = vpack.c.bf16 %v332, %v332
    %v335 = vld [vmem:[#allocation8] sm:$0xf]
    %v336 = vld [vmem:[#allocation8 + $0x4] sm:$0xf]
    %v337 = vld [vmem:[#allocation8 + $0x8] sm:$0xf]
    %v338 = vld [vmem:[#allocation8 + $0xc] sm:$0xf]
    %v339 = vld [vmem:[#allocation8 + $0x10] sm:$0xf]
    %v340 = vld [vmem:[#allocation8 + $0x14] sm:$0xf]
    %v341 = vld [vmem:[#allocation8 + $0x18] sm:$0xf]
    %v342 = vld [vmem:[#allocation8 + $0x1c] sm:$0xf]
    %v343 = vld [vmem:[#allocation8 + $0x20] sm:$0xf]
    %v344 = vld [vmem:[#allocation8 + $0x24] sm:$0xf]
    %v345 = vld [vmem:[#allocation8 + $0x28] sm:$0xf]
    %v346 = vld [vmem:[#allocation8 + $0x2c] sm:$0xf]
    %v347 = vld [vmem:[#allocation8 + $0x30] sm:$0xf]
    %v348 = vld [vmem:[#allocation8 + $0x34] sm:$0xf]
    %v349 = vld [vmem:[#allocation8 + $0x38] sm:$0xf]
    %v350 = vld [vmem:[#allocation8 + $0x3c] sm:$0xf]
    %v351 = vld [vmem:[#allocation8 + $0x40] sm:$0xf]
    %v352 = vld [vmem:[#allocation8 + $0x44] sm:$0xf]
    %v353 = vld [vmem:[#allocation8 + $0x48] sm:$0xf]
    %v354 = vld [vmem:[#allocation8 + $0x4c] sm:$0xf]
    %v355 = vld [vmem:[#allocation8 + $0x50] sm:$0xf]
    %v356 = vld [vmem:[#allocation8 + $0x54] sm:$0xf]
    %v357 = vld [vmem:[#allocation8 + $0x58] sm:$0xf]
    %v358 = vld [vmem:[#allocation8 + $0x5c] sm:$0xf]
    %v359 = vld [vmem:[#allocation8 + $0x60] sm:$0xf]
    %v360 = vld [vmem:[#allocation8 + $0x64] sm:$0xf]
    %v361 = vld [vmem:[#allocation8 + $0x68] sm:$0xf]
    %v362 = vld [vmem:[#allocation8 + $0x6c] sm:$0xf]
    %v363 = vld [vmem:[#allocation8 + $0x70] sm:$0xf]
    %v364 = vld [vmem:[#allocation8 + $0x74] sm:$0xf]
    %v365 = vld [vmem:[#allocation8 + $0x78] sm:$0xf]
    %v366 = vld [vmem:[#allocation8 + $0x7c] sm:$0xf]
    %v367 = vld [vmem:[%s6] sm:$0x1]
    %v369 = vlaneseq
    %v370 = vshrl.u32 %v369, 7
    %v371 = vsub.s32 0, %v370
    %v372 = vrot.slane %v367, %v371
    %v406 = vunpack.c.l.b16 %v335
    %v407 = vunpack.c.l.b16 %v336
    %v408 = vunpack.c.l.b16 %v337
    %v409 = vunpack.c.l.b16 %v338
    %v410 = vunpack.c.l.b16 %v339
    %v411 = vunpack.c.l.b16 %v340
    %v412 = vunpack.c.l.b16 %v341
    %v413 = vunpack.c.l.b16 %v342
    %v414 = vunpack.c.l.b16 %v343
    %v415 = vunpack.c.l.b16 %v344
    %v416 = vunpack.c.l.b16 %v345
    %v417 = vunpack.c.l.b16 %v346
    %v418 = vunpack.c.l.b16 %v347
    %v419 = vunpack.c.l.b16 %v348
    %v420 = vunpack.c.l.b16 %v349
    %v421 = vunpack.c.l.b16 %v350
    %v422 = vunpack.c.l.b16 %v351
    %v423 = vunpack.c.l.b16 %v352
    %v424 = vunpack.c.l.b16 %v353
    %v425 = vunpack.c.l.b16 %v354
    %v426 = vunpack.c.l.b16 %v355
    %v427 = vunpack.c.l.b16 %v356
    %v428 = vunpack.c.l.b16 %v357
    %v429 = vunpack.c.l.b16 %v358
    %v430 = vunpack.c.l.b16 %v359
    %v431 = vunpack.c.l.b16 %v360
    %v432 = vunpack.c.l.b16 %v361
    %v433 = vunpack.c.l.b16 %v362
    %v434 = vunpack.c.l.b16 %v363
    %v435 = vunpack.c.l.b16 %v364
    %v436 = vunpack.c.l.b16 %v365
    %v437 = vunpack.c.l.b16 %v366
    %v438 = vpack.c.b16 %v407, %v406
    %v439 = vpack.c.b16 %v409, %v408
    %v440 = vpack.c.b16 %v411, %v410
    %v441 = vpack.c.b16 %v413, %v412
    %v442 = vpack.c.b16 %v415, %v414
    %v443 = vpack.c.b16 %v417, %v416
    %v444 = vpack.c.b16 %v419, %v418
    %v445 = vpack.c.b16 %v421, %v420
    %v446 = vpack.c.b16 %v423, %v422
    %v447 = vpack.c.b16 %v425, %v424
    %v448 = vpack.c.b16 %v427, %v426
    %v449 = vpack.c.b16 %v429, %v428
    %v450 = vpack.c.b16 %v431, %v430
    %v451 = vpack.c.b16 %v433, %v432
    %v452 = vpack.c.b16 %v435, %v434
    %v453 = vpack.c.b16 %v437, %v436
    %470 = vmatprep.subr.bf16.mxu0 0
    %471 = vmatpush1.bf16.msra.mxu0 %v445
    %472 = vmatprep.subr.bf16.mxu0 0
    %473 = vmatpush1.bf16.msra.mxu0 %v444
    %474 = vmatprep.subr.bf16.mxu0 0
    %475 = vmatpush1.bf16.msra.mxu0 %v443
    %476 = vmatprep.subr.bf16.mxu0 0
    %477 = vmatpush1.bf16.msra.mxu0 %v442
    %478 = vmatprep.subr.bf16.mxu0 0
    %479 = vmatpush1.bf16.msra.mxu0 %v441
    %480 = vmatprep.subr.bf16.mxu0 0
    %481 = vmatpush1.bf16.msra.mxu0 %v440
    %482 = vmatprep.subr.bf16.mxu0 0
    %483 = vmatpush1.bf16.msra.mxu0 %v439
    %484 = vmatprep.subr.bf16.mxu0 0
    %485 = vmatpush1.bf16.msra.mxu0 %v438
    %486 = vmatprep.subr.bf16.mxu0 0
    %487 = vmatpush2.bf16.msra.mxu0 %v453
    %488 = vmatprep.subr.bf16.mxu0 0
    %489 = vmatpush2.bf16.msra.mxu0 %v452
    %490 = vmatprep.subr.bf16.mxu0 0
    %491 = vmatpush2.bf16.msra.mxu0 %v451
    %492 = vmatprep.subr.bf16.mxu0 0
    %493 = vmatpush2.bf16.msra.mxu0 %v450
    %494 = vmatprep.subr.bf16.mxu0 0
    %495 = vmatpush2.bf16.msra.mxu0 %v449
    %496 = vmatprep.subr.bf16.mxu0 0
    %497 = vmatpush2.bf16.msra.mxu0 %v448
    %498 = vmatprep.subr.bf16.mxu0 0
    %499 = vmatpush2.bf16.msra.mxu0 %v447
    %500 = vmatprep.subr.bf16.mxu0 0
    %501 = vmatpush2.bf16.msra.mxu0 %v446
    %502 = vmatprep.mubr.bf16.mxu0 %v334
    %503 = vmatmul.mubr.bf16.gmra.mxu0 %v333
    %v504 = vpop.f32.mrf.mxu0
    %v505 = vadd.f32 %v372, %v504
    %v506 = vpop.f32.mrf.mxu0
    %v507 = vpop.f32.mrf.mxu0
    %v508 = vpop.f32.mrf.mxu0
    %509 = vdwg.mxu0
    %v510 = vmax.f32 %v505, 0.0
    %v511 = vpack.c.bf16 %v510, %v510
    %v512 = vld [vmem:[#allocation10] sm:$0xf]
    %v513 = vld [vmem:[#allocation10 + $0x4] sm:$0xf]
    %v514 = vld [vmem:[#allocation10 + $0x8] sm:$0xf]
    %v515 = vld [vmem:[#allocation10 + $0xc] sm:$0xf]
    %v516 = vld [vmem:[#allocation10 + $0x10] sm:$0xf]
    %v517 = vld [vmem:[#allocation10 + $0x14] sm:$0xf]
    %v518 = vld [vmem:[#allocation10 + $0x18] sm:$0xf]
    %v519 = vld [vmem:[#allocation10 + $0x1c] sm:$0xf]
    %v520 = vld [vmem:[#allocation10 + $0x20] sm:$0xf]
    %v521 = vld [vmem:[#allocation10 + $0x24] sm:$0xf]
    %v522 = vld [vmem:[#allocation10 + $0x28] sm:$0xf]
    %v523 = vld [vmem:[#allocation10 + $0x2c] sm:$0xf]
    %v524 = vld [vmem:[#allocation10 + $0x30] sm:$0xf]
    %v525 = vld [vmem:[#allocation10 + $0x34] sm:$0xf]
    %v526 = vld [vmem:[#allocation10 + $0x38] sm:$0xf]
    %v527 = vld [vmem:[#allocation10 + $0x3c] sm:$0xf]
    %v528 = vld [vmem:[%s8] sm:$0x1]
    %v530 = vlaneseq
    %v531 = vshrl.u32 %v530, 7
    %v532 = vsub.s32 0, %v531
    %v533 = vrot.slane %v528, %v532
    %v551 = vunpack.c.l.b16 %v512
    %v552 = vunpack.c.l.b16 %v513
    %v553 = vunpack.c.l.b16 %v514
    %v554 = vunpack.c.l.b16 %v515
    %v555 = vunpack.c.l.b16 %v516
    %v556 = vunpack.c.l.b16 %v517
    %v557 = vunpack.c.l.b16 %v518
    %v558 = vunpack.c.l.b16 %v519
    %v559 = vunpack.c.l.b16 %v520
    %v560 = vunpack.c.l.b16 %v521
    %v561 = vunpack.c.l.b16 %v522
    %v562 = vunpack.c.l.b16 %v523
    %v563 = vunpack.c.l.b16 %v524
    %v564 = vunpack.c.l.b16 %v525
    %v565 = vunpack.c.l.b16 %v526
    %v566 = vunpack.c.l.b16 %v527
    %v567 = vpack.c.b16 %v552, %v551
    %v568 = vpack.c.b16 %v554, %v553
    %v569 = vpack.c.b16 %v556, %v555
    %v570 = vpack.c.b16 %v558, %v557
    %v571 = vpack.c.b16 %v560, %v559
    %v572 = vpack.c.b16 %v562, %v561
    %v573 = vpack.c.b16 %v564, %v563
    %v574 = vpack.c.b16 %v566, %v565
    %583 = vmatprep.subr.bf16.mxu0 0
    %584 = vmatpush1.bf16.msra.mxu0 %v574
    %585 = vmatprep.subr.bf16.mxu0 0
    %586 = vmatpush1.bf16.msra.mxu0 %v573
    %587 = vmatprep.subr.bf16.mxu0 0
    %588 = vmatpush1.bf16.msra.mxu0 %v572
    %589 = vmatprep.subr.bf16.mxu0 0
    %590 = vmatpush1.bf16.msra.mxu0 %v571
    %591 = vmatprep.subr.bf16.mxu0 0
    %592 = vmatpush1.bf16.msra.mxu0 %v570
    %593 = vmatprep.subr.bf16.mxu0 0
    %594 = vmatpush1.bf16.msra.mxu0 %v569
    %595 = vmatprep.subr.bf16.mxu0 0
    %596 = vmatpush1.bf16.msra.mxu0 %v568
    %597 = vmatprep.subr.bf16.mxu0 0
    %598 = vmatpush1.bf16.msra.mxu0 %v567
    %599 = vmatprep.subr.bf16.mxu0 0
    %600 = vmatpush2.bf16.msra.mxu0 0
    %601 = vmatprep.subr.bf16.mxu0 0
    %602 = vmatpush2.bf16.msra.mxu0 0
    %603 = vmatprep.subr.bf16.mxu0 0
    %604 = vmatpush2.bf16.msra.mxu0 0
    %605 = vmatprep.subr.bf16.mxu0 0
    %606 = vmatpush2.bf16.msra.mxu0 0
    %607 = vmatprep.subr.bf16.mxu0 0
    %608 = vmatpush2.bf16.msra.mxu0 0
    %609 = vmatprep.subr.bf16.mxu0 0
    %610 = vmatpush2.bf16.msra.mxu0 0
    %611 = vmatprep.subr.bf16.mxu0 0
    %612 = vmatpush2.bf16.msra.mxu0 0
    %613 = vmatprep.subr.bf16.mxu0 0
    %614 = vmatpush2.bf16.msra.mxu0 0
    %615 = vmatprep.mubr.bf16.mxu0 0
    %616 = vmatmul.mubr.bf16.gmra.mxu0 %v511
    %v617 = vpop.f32.mrf.mxu0
    %v618 = vadd.f32 %v533, %v617
    %v619 = vpop.f32.mrf.mxu0
    %v620 = vpop.f32.mrf.mxu0
    %v621 = vpop.f32.mrf.mxu0
    %622 = vdwg.mxu0
    %v623 = vmax.f32 %v618, 0.0
    %v624 = vpack.c.bf16 %v623, %v623
    %v625 = vld [vmem:[#allocation11] sm:$0xf]
    %v626 = vld [vmem:[#allocation11 + $0x4] sm:$0xf]
    %v627 = vld [vmem:[#allocation11 + $0x8] sm:$0xf]
    %v628 = vld [vmem:[#allocation11 + $0xc] sm:$0xf]
    %v629 = vld [vmem:[#allocation11 + $0x10] sm:$0xf]
    %v630 = vld [vmem:[#allocation11 + $0x14] sm:$0xf]
    %v631 = vld [vmem:[#allocation11 + $0x18] sm:$0xf]
    %v632 = vld [vmem:[#allocation11 + $0x1c] sm:$0xf]
    %v633 = vld [vmem:[#allocation11 + $0x20] sm:$0xf]
    %v634 = vld [vmem:[#allocation11 + $0x24] sm:$0xf]
    %v635 = vld [vmem:[#allocation11 + $0x28] sm:$0xf]
    %v636 = vld [vmem:[#allocation11 + $0x2c] sm:$0xf]
    %v637 = vld [vmem:[#allocation11 + $0x30] sm:$0xf]
    %v638 = vld [vmem:[#allocation11 + $0x34] sm:$0xf]
    %v639 = vld [vmem:[#allocation11 + $0x38] sm:$0xf]
    %v640 = vld [vmem:[#allocation11 + $0x3c] sm:$0xf]
    %v641 = vld [vmem:[%s10] sm:$0x1]
    %v643 = vlaneseq
    %v644 = vshrl.u32 %v643, 7
    %v645 = vsub.s32 0, %v644
    %v646 = vrot.slane %v641, %v645
    %v664 = vunpack.c.l.b16 %v625
    %v665 = vunpack.c.l.b16 %v626
    %v666 = vunpack.c.l.b16 %v627
    %v667 = vunpack.c.l.b16 %v628
    %v668 = vunpack.c.l.b16 %v629
    %v669 = vunpack.c.l.b16 %v630
    %v670 = vunpack.c.l.b16 %v631
    %v671 = vunpack.c.l.b16 %v632
    %v672 = vunpack.c.l.b16 %v633
    %v673 = vunpack.c.l.b16 %v634
    %v674 = vunpack.c.l.b16 %v635
    %v675 = vunpack.c.l.b16 %v636
    %v676 = vunpack.c.l.b16 %v637
    %v677 = vunpack.c.l.b16 %v638
    %v678 = vunpack.c.l.b16 %v639
    %v679 = vunpack.c.l.b16 %v640
    %v680 = vpack.c.b16 %v665, %v664
    %v681 = vpack.c.b16 %v667, %v666
    %v682 = vpack.c.b16 %v669, %v668
    %v683 = vpack.c.b16 %v671, %v670
    %v684 = vpack.c.b16 %v673, %v672
    %v685 = vpack.c.b16 %v675, %v674
    %v686 = vpack.c.b16 %v677, %v676
    %v687 = vpack.c.b16 %v679, %v678
    %696 = vmatprep.subr.bf16.mxu0 0
    %697 = vmatpush1.bf16.msra.mxu0 %v687
    %698 = vmatprep.subr.bf16.mxu0 0
    %699 = vmatpush1.bf16.msra.mxu0 %v686
    %700 = vmatprep.subr.bf16.mxu0 0
    %701 = vmatpush1.bf16.msra.mxu0 %v685
    %702 = vmatprep.subr.bf16.mxu0 0
    %703 = vmatpush1.bf16.msra.mxu0 %v684
    %704 = vmatprep.subr.bf16.mxu0 0
    %705 = vmatpush1.bf16.msra.mxu0 %v683
    %706 = vmatprep.subr.bf16.mxu0 0
    %707 = vmatpush1.bf16.msra.mxu0 %v682
    %708 = vmatprep.subr.bf16.mxu0 0
    %709 = vmatpush1.bf16.msra.mxu0 %v681
    %710 = vmatprep.subr.bf16.mxu0 0
    %711 = vmatpush1.bf16.msra.mxu0 %v680
    %712 = vmatprep.subr.bf16.mxu0 0
    %713 = vmatpush2.bf16.msra.mxu0 0
    %714 = vmatprep.subr.bf16.mxu0 0
    %715 = vmatpush2.bf16.msra.mxu0 0
    %716 = vmatprep.subr.bf16.mxu0 0
    %717 = vmatpush2.bf16.msra.mxu0 0
    %718 = vmatprep.subr.bf16.mxu0 0
    %719 = vmatpush2.bf16.msra.mxu0 0
    %720 = vmatprep.subr.bf16.mxu0 0
    %721 = vmatpush2.bf16.msra.mxu0 0
    %722 = vmatprep.subr.bf16.mxu0 0
    %723 = vmatpush2.bf16.msra.mxu0 0
    %724 = vmatprep.subr.bf16.mxu0 0
    %725 = vmatpush2.bf16.msra.mxu0 0
    %726 = vmatprep.subr.bf16.mxu0 0
    %727 = vmatpush2.bf16.msra.mxu0 0
    %728 = vmatprep.mubr.bf16.mxu0 0
    %729 = vmatmul.mubr.bf16.gmra.mxu0 %v624
    %v730 = vpop.f32.mrf.mxu0
    %v731 = vadd.f32 %v646, %v730
    %v732 = vpop.f32.mrf.mxu0
    %v733 = vpop.f32.mrf.mxu0
    %v734 = vpop.f32.mrf.mxu0
    %735 = vdwg.mxu0
    %v736 = vpack.c.bf16 %v731, %v731
    %737 = vst [vmem:[#allocation13] sm:$0xf] %v736
    // Predicated region
    $region70: #{tpu_custom_call.1} parent=1 // pred_check
      _
    $region71: #{tpu_custom_call.1} parent=1 // pred_check_branch
      %739 = sbr.rel (0) target = $region73
    $region72: #{tpu_custom_call.1} parent=1 // pred_region
      %s741 = ssub.s32 64, 64
      %742 = vsyncadd [#allocation4], %s741
      %s744 = sshll.u32 [#allocation13], 4
      %s745 = int_to_ptr.vmem [resolvable:$true] %s744
      %747 = dma.vmem_to_hbm [thread:$0]  %s745, 64, %s11, [#allocation4]
    $region73: #{tpu_custom_call.1} parent=1 // pred_fallthru
      _
    // Predicated region
    $region74: #{tpu_custom_call.1} parent=1 // pred_check
      _
    $region75: #{tpu_custom_call.1} parent=1 // pred_check_branch
      %749 = sbr.rel (0) target = $region77
    $region76: #{tpu_custom_call.1} parent=1 // pred_region
      %750 = dma.done [#allocation4], 64
    $region77: #{tpu_custom_call.1} parent=1 // pred_fallthru
      _
    %751 = vsyncpa [#allocation3], 1
    %752 = vsyncpa [#allocation6], 1
    %753 = vsyncpa [#allocation9], 1
    %754 = vsyncpa [#allocation12], 1
    %755 = vsyncpa [#allocation4], 1

</llo_original>
